<compile_context>
chip_gen: v7x
topology: tpu7x:2x2x1
jax: 0.10.0
libtpu: 0.0.40
codegen_flags: <defaults>
</compile_context>

<pallas_src>
import functools

import jax
import jax.numpy as jnp
from jax.experimental import pallas as pl
from jax.experimental.pallas import tpu as pltpu


def _round_up(a, b):
    return -(-a // b) * b


# ----------------------------- kernel_size == 3 fast path ---------------------

def _med3(a, b, c):
    """Elementwise median of three (4 min/max ops)."""
    return jnp.maximum(jnp.minimum(a, b), jnp.minimum(jnp.maximum(a, b), c))


def _sort3(a, b, c):
    """Elementwise (min, med, max) of three (6 min/max ops)."""
    lo_ab = jnp.minimum(a, b)
    hi_ab = jnp.maximum(a, b)
    lo = jnp.minimum(lo_ab, c)
    hi = jnp.maximum(hi_ab, c)
    mi = jnp.maximum(lo_ab, jnp.minimum(hi_ab, c))
    return lo, mi, hi


def _median3x3_kernel(x_ref, o_ref):
    """3x3 median on a packed 2D tile.

    The tile stacks Bn reflect-padded slabs along sublanes (Hp rows each) and G
    slabs along lanes (Wp cols each), so every *valid* output pixel's 3x3
    window lives entirely inside its own slab.  The 9 taps are produced with
    cheap XLU rolls of the single resident tile; circular wrap-around only
    pollutes halo / alignment-padding rows+cols, which the wrapper crops.
    Median-of-9 uses the 19-comparator selection network (~30 VPU ops/elem).
    """
    x = x_ref[...]
    nrows, ncols = x.shape
    max_lo = None     # max of the three per-row minima
    min_hi = None     # min of the three per-row maxima
    mids = []         # the three per-row medians
    # Row taps at i-1, i, i+1 (circular; wrap lands in cropped halo rows).
    for row_shift in (1, 0, nrows - 1):
        row = x if row_shift == 0 else pltpu.roll(x, shift=row_shift, axis=0)
        left = pltpu.roll(row, shift=1, axis=1)            # tap at col c-1
        right = pltpu.roll(row, shift=ncols - 1, axis=1)   # tap at col c+1
        lo, mi, hi = _sort3(left, row, right)
        max_lo = lo if max_lo is None else jnp.maximum(max_lo, lo)
        min_hi = hi if min_hi is None else jnp.minimum(min_hi, hi)
        mids.append(mi)
    med = _med3(max_lo, _med3(*mids), min_hi)
    o_ref[...] = med.astype(o_ref.dtype)


def _median3x3_batched(x):
    """3x3 reflect-padded median filter over a batch of 2D slabs.

    x: (N, H, W) -> (N, H, W), computed by a single pallas_call.
    """
    N, H, W = x.shape
    if H < 2 or W < 2:
        raise ValueError("reflect padding requires H >= 2 and W >= 2")
    dt = x.dtype
    pad = 1
    Hp0, Wp = H + 2 * pad, W + 2 * pad

    # Reflect-pad once for the whole folded batch.
    xp = jnp.pad(x, ((0, 0), (pad, pad), (pad, pad)), mode="reflect")

    # Sublane-align each slab (extra zero rows are never read by valid outputs).
    Hp = _round_up(Hp0, 8)
    if Hp != Hp0:
        xp = jnp.pad(xp, ((0, 0), (0, Hp - Hp0), (0, 0)))

    # Pack G slabs side by side along the lane axis -> lane-dense vregs/stores.
    # Each slab keeps its own halo, so valid outputs never read a neighbor slab.
    G = max(1, min(N, 128 // Wp))
    Npad = _round_up(N, G)
    if Npad != N:
        xp = jnp.pad(xp, ((0, Npad - N), (0, 0), (0, 0)))
    Ng = Npad // G
    xk = xp.reshape(Ng, G, Hp, Wp).transpose(0, 2, 1, 3).reshape(Ng, Hp, G * Wp)
    Wt = _round_up(G * Wp, 128)
    if Wt != G * Wp:
        xk = jnp.pad(xk, ((0, 0), (0, 0), (0, Wt - G * Wp)))

    # Stack Bn packed slabs per grid step (amortizes ~0.35us/step grid
    # overhead) while keeping the block plus ~10 live intermediates well under
    # the scoped VMEM budget on every generation (v7x: 64 MiB physical).
    slab_bytes = Hp * Wt * dt.itemsize
    Bn = max(1, min(Ng, (512 * 1024) // slab_bytes, 64))
    n_steps = -(-Ng // Bn)
    if n_steps * Bn != Ng:
        xk = jnp.pad(xk, ((0, n_steps * Bn - Ng), (0, 0), (0, 0)))

    rows_per_block = Bn * Hp
    x2d = xk.reshape(n_steps * rows_per_block, Wt)

    out2d = pl.pallas_call(
        _median3x3_kernel,
        out_shape=jax.ShapeDtypeStruct(x2d.shape, dt),
        grid=(n_steps,),
        in_specs=[pl.BlockSpec((rows_per_block, Wt), lambda n: (n, 0))],
        out_specs=pl.BlockSpec((rows_per_block, Wt), lambda n: (n, 0)),
        compiler_params=pltpu.CompilerParams(
            dimension_semantics=("parallel",)),
    )(x2d)

    # Unpack: drop padding slabs / rows / cols, undo lane packing, crop halos.
    out = out2d.reshape(n_steps * Bn, Hp, Wt)[:Ng, :, :G * Wp]
    out = out.reshape(Ng, Hp, G, Wp).transpose(0, 2, 1, 3).reshape(Ng * G, Hp, Wp)
    return out[:N, pad:pad + H, pad:pad + W]


# --------------------- generic odd kernel_size fallback -----------------------

def _compare_exchange(a, b):
    return jnp.minimum(a, b), jnp.maximum(a, b)


def _median_of_list(vals):
    """Elementwise median of an odd-length list via odd-even transposition."""
    vals = list(vals)
    n = len(vals)
    for _ in range(n):
        for i in range(0, n - 1, 2):
            vals[i], vals[i + 1] = _compare_exchange(vals[i], vals[i + 1])
        for i in range(1, n - 1, 2):
            vals[i], vals[i + 1] = _compare_exchange(vals[i], vals[i + 1])
    return vals[(n - 1) // 2]


def _median_generic_kernel(xp_ref, o_ref, *, H, W, K):
    xp = xp_ref[0]
    vals = [xp[dy:dy + H, dx:dx + W] for dy in range(K) for dx in range(K)]
    o_ref[0] = _median_of_list(vals).astype(o_ref.dtype)


def _median_generic_batched(x, K):
    N, H, W = x.shape
    pad = K // 2
    if H <= pad or W <= pad:
        raise ValueError("reflect padding requires H, W > kernel_size // 2")
    xp = jnp.pad(x, ((0, 0), (pad, pad), (pad, pad)), mode="reflect")
    _, Hp, Wp = xp.shape
    kern = functools.partial(_median_generic_kernel, H=H, W=W, K=K)
    return pl.pallas_call(
        kern,
        out_shape=jax.ShapeDtypeStruct((N, H, W), x.dtype),
        grid=(N,),
        in_specs=[pl.BlockSpec((1, Hp, Wp), lambda n: (n, 0, 0))],
        out_specs=pl.BlockSpec((1, H, W), lambda n: (n, 0, 0)),
        compiler_params=pltpu.CompilerParams(
            dimension_semantics=("parallel",)),
    )(xp)


def _median2d_core(x, kernel_size):
    """x: (N, H, W) -> (N, H, W)."""
    if kernel_size == 3:
        return _median3x3_batched(x)
    return _median_generic_batched(x, kernel_size)


# ------------------------------- module ports ---------------------------------

def median_filter_2d(image, kernel_size=3):
    """Port of MedianFilter2D.forward."""
    if kernel_size % 2 == 0:
        raise ValueError("Kernel size must be odd")
    image = jnp.asarray(image)
    if image.ndim == 2:
        image = image[None, None]
    elif image.ndim == 3:
        image = image[:, None]
    lead = image.shape[:-2]
    H, W = image.shape[-2:]
    out = _median2d_core(image.reshape(-1, H, W), kernel_size)
    return out.reshape(*lead, H, W)


def median_filter_3d(volume, kernel_size=3):
    """Port of MedianFilter3D.forward (unsqueeze / unbind(smallest dim) /
    2D-median each slice / stack), with the per-slice loop folded into a
    single pallas_call over the flattened batch."""
    if kernel_size % 2 == 0:
        raise ValueError("Kernel size must be odd")
    volume = jnp.asarray(volume)
    if volume.ndim == 3:
        volume = volume[None, None]
    elif volume.ndim == 4:
        volume = volume[:, None]
    shape = volume.shape
    smallest_dim = list(shape).index(min(shape))  # first min, like torch .index()
    # unbind(smallest_dim) -> each slice is 4D and MedianFilter2D filters its
    # last two dims.  Equivalent folded form: move that axis to the front,
    # flatten everything but the last two dims into one batch, run one kernel,
    # then restore the layout.
    v = jnp.moveaxis(volume, smallest_dim, 0)
    vshape = v.shape
    H, W = vshape[-2], vshape[-1]
    out = _median2d_core(v.reshape(-1, H, W), kernel_size)
    out = out.reshape(vshape)
    return jnp.moveaxis(out, 0, smallest_dim)


# ---------------- pure-JAX reference (for verification only) ------------------

def _ref_median2d(image, K):
    if image.ndim == 2:
        image = image[None, None]
    elif image.ndim == 3:
        image = image[:, None]
    pad = K // 2
    H, W = image.shape[-2:]
    xp = jnp.pad(image, ((0, 0), (0, 0), (pad, pad), (pad, pad)),
                 mode="reflect")
    patches = jnp.stack(
        [xp[..., dy:dy + H, dx:dx + W] for dy in range(K) for dx in range(K)],
        axis=-1)
    return jnp.sort(patches, axis=-1)[..., (K * K - 1) // 2]


def _ref_median3d(volume, K):
    if volume.ndim == 3:
        volume = volume[None, None]
    elif volume.ndim == 4:
        volume = volume[:, None]
    shape = volume.shape
    sd = list(shape).index(min(shape))
    slices = [jnp.take(volume, i, axis=sd) for i in range(shape[sd])]
    return jnp.stack([_ref_median2d(s, K) for s in slices], axis=sd)


if __name__ == "__main__":
    key = jax.random.PRNGKey(0)
    # [batch, depth, height, width] — the torch forward unsqueezes a channel
    # dim, unbinds the (size-1) smallest dim, and 3x3-median-filters each
    # (H, W) slice.
    x = jax.random.normal(key, (2, 4, 16, 16), dtype=jnp.float32)

    out = median_filter_3d(x, kernel_size=3)
    out = jax.block_until_ready(out)
    assert out.shape == (2, 1, 4, 16, 16), out.shape
    ref = _ref_median3d(x, 3)
    assert jnp.allclose(out, ref, atol=1e-6), "Pallas 3D median != reference"

    # Standalone 2D filter path.
    img = jax.random.normal(jax.random.PRNGKey(1), (3, 16, 16), dtype=jnp.float32)
    out2 = jax.block_until_ready(median_filter_2d(img, kernel_size=3))
    assert out2.shape == (3, 1, 16, 16), out2.shape
    ref2 = _ref_median2d(img, 3)
    assert jnp.allclose(out2, ref2, atol=1e-6), "Pallas 2D median != reference"

    print("KERNEL_OK")
</pallas_src>

<mosaic_0001>
module attributes {stable_mosaic.version = 11 : i64} {
  func.func @_median3x3_kernel(%arg0: i32, %arg1: memref<48x128xf32, #tpu.memory_space<vmem>>, %arg2: memref<48x128xf32, #tpu.memory_space<vmem>>) attributes {dimension_semantics = [#tpu.dimension_semantics<parallel>], iteration_bounds = array<i64: 1>, scalar_prefetch = 0 : i64, scratch_operands = 0 : i64, tpu.core_type = #tpu.core_type<tc>, window_params = [{transform_indices = @transform_0, window_bounds = array<i64: 48, 128>}, {transform_indices = @transform_1, window_bounds = array<i64: 48, 128>}]} {
    %c0 = arith.constant 0 : index
    %c0_0 = arith.constant 0 : index
    %0 = vector.load %arg1[%c0, %c0_0] : memref<48x128xf32, #tpu.memory_space<vmem>>, vector<48x128xf32>
    %c1_i32 = arith.constant 1 : i32
    %1 = tpu.dynamic_rotate %0 by %c1_i32 dim 0 : vector<48x128xf32>, i32 -> vector<48x128xf32>
    %c1_i32_1 = arith.constant 1 : i32
    %2 = tpu.dynamic_rotate %1 by %c1_i32_1 dim 1 : vector<48x128xf32>, i32 -> vector<48x128xf32>
    %c127_i32 = arith.constant 127 : i32
    %3 = tpu.dynamic_rotate %1 by %c127_i32 dim 1 : vector<48x128xf32>, i32 -> vector<48x128xf32>
    %4 = arith.minimumf %2, %1 : vector<48x128xf32>
    %5 = arith.maximumf %2, %1 : vector<48x128xf32>
    %6 = arith.minimumf %4, %3 : vector<48x128xf32>
    %7 = arith.maximumf %5, %3 : vector<48x128xf32>
    %8 = arith.minimumf %5, %3 : vector<48x128xf32>
    %9 = arith.maximumf %4, %8 : vector<48x128xf32>
    %c1_i32_2 = arith.constant 1 : i32
    %10 = tpu.dynamic_rotate %0 by %c1_i32_2 dim 1 : vector<48x128xf32>, i32 -> vector<48x128xf32>
    %c127_i32_3 = arith.constant 127 : i32
    %11 = tpu.dynamic_rotate %0 by %c127_i32_3 dim 1 : vector<48x128xf32>, i32 -> vector<48x128xf32>
    %12 = arith.minimumf %10, %0 : vector<48x128xf32>
    %13 = arith.maximumf %10, %0 : vector<48x128xf32>
    %14 = arith.minimumf %12, %11 : vector<48x128xf32>
    %15 = arith.maximumf %13, %11 : vector<48x128xf32>
    %16 = arith.minimumf %13, %11 : vector<48x128xf32>
    %17 = arith.maximumf %12, %16 : vector<48x128xf32>
    %18 = arith.maximumf %6, %14 : vector<48x128xf32>
    %19 = arith.minimumf %7, %15 : vector<48x128xf32>
    %c47_i32 = arith.constant 47 : i32
    %20 = tpu.dynamic_rotate %0 by %c47_i32 dim 0 : vector<48x128xf32>, i32 -> vector<48x128xf32>
    %c1_i32_4 = arith.constant 1 : i32
    %21 = tpu.dynamic_rotate %20 by %c1_i32_4 dim 1 : vector<48x128xf32>, i32 -> vector<48x128xf32>
    %c127_i32_5 = arith.constant 127 : i32
    %22 = tpu.dynamic_rotate %20 by %c127_i32_5 dim 1 : vector<48x128xf32>, i32 -> vector<48x128xf32>
    %23 = arith.minimumf %21, %20 : vector<48x128xf32>
    %24 = arith.maximumf %21, %20 : vector<48x128xf32>
    %25 = arith.minimumf %23, %22 : vector<48x128xf32>
    %26 = arith.maximumf %24, %22 : vector<48x128xf32>
    %27 = arith.minimumf %24, %22 : vector<48x128xf32>
    %28 = arith.maximumf %23, %27 : vector<48x128xf32>
    %29 = arith.maximumf %18, %25 : vector<48x128xf32>
    %30 = arith.minimumf %19, %26 : vector<48x128xf32>
    %31 = arith.minimumf %9, %17 : vector<48x128xf32>
    %32 = arith.maximumf %9, %17 : vector<48x128xf32>
    %33 = arith.minimumf %32, %28 : vector<48x128xf32>
    %34 = arith.maximumf %31, %33 : vector<48x128xf32>
    %35 = arith.minimumf %29, %34 : vector<48x128xf32>
    %36 = arith.maximumf %29, %34 : vector<48x128xf32>
    %37 = arith.minimumf %36, %30 : vector<48x128xf32>
    %38 = arith.maximumf %35, %37 : vector<48x128xf32>
    %c0_6 = arith.constant 0 : index
    %c0_7 = arith.constant 0 : index
    %39 = vector.load %arg2[%c0_6, %c0_7] : memref<48x128xf32, #tpu.memory_space<vmem>>, vector<48x128xf32>
    tpu.vector_store %arg2[%c0_6, %c0_7], %38 {strides = array<i32>} : memref<48x128xf32, #tpu.memory_space<vmem>>, vector<48x128xf32>,
    return
  }
  func.func @transform_0(%arg0: i32) -> (i32, i32) {
    %c0_i32 = arith.constant 0 : i32
    %c0_i32_0 = arith.constant 0 : i32
    return %arg0, %c0_i32 : i32, i32
  }
  func.func @transform_1(%arg0: i32) -> (i32, i32) {
    %c0_i32 = arith.constant 0 : i32
    %c0_i32_0 = arith.constant 0 : i32
    return %arg0, %c0_i32 : i32, i32
  }
}

</mosaic_0001>

<llo_original>
// kernel: tpu_custom_call.1
$region0: #{tpu_custom_call.1}
  #allocation0 [shape = 'u32[]', space=smem, size = 0x4, offset = 0x4, fixed_abs, tag = 'smem constant byte address 0x4 - core index']
  #allocation1 [shape = 'u32[144,128]{1,0:T(1,128)}', space=vmem, size = 0x12000, scoped, tag = 'internal scratch']
  %s0 = inlined_call_operand.hbm [shape: f32[48,128], index: 0, kind: input, shape index: {}]
  %s1 = inlined_call_operand.hbm [shape: f32[48,128], index: 1, kind: output, shape index: {}]
  %s2 = sld [smem:[#allocation0]]
  $region18: #{tpu_custom_call.1} parent=0
    _
  %s4 = ssub.s32 1, %s2
  %s5 = scalar_select 0, %s4, %s2
  $region1: #{tpu_custom_call.1} parent=0
    #allocation2 [shape = 'u8[24576]{0}', space=vmem, size = 0x6000, scoped, tag = 'input window, operand 0, single buffered']
    #allocation3 [shape = 's32[1]{0}', space=sflag, size = 0x4, scoped, tag = 'scoped memory for tpu_custom_call.1']
    #allocation4 [shape = 's32[1]{0}', space=sflag, size = 0x4, scoped, tag = 'scoped memory for tpu_custom_call.1']
    #allocation5 [shape = 'u8[24576]{0}', space=vmem, size = 0x6000, scoped, tag = 'output window, operand 0, single buffered']
    %6 = vsyncpa [#allocation3], 0
    %7 = vsyncpa [#allocation4], 0
    // Predicated region
    $region2: #{tpu_custom_call.1} parent=1 // pred_check
      _
    $region3: #{tpu_custom_call.1} parent=1 // pred_check_branch
      %9 = sbr.rel (0) target = $region5
    $region4: #{tpu_custom_call.1} parent=1 // pred_region
      %s11 = ssub.s32 768, 768
      %12 = vsyncadd [#allocation3], %s11
      %s13 = sshll.u32 [#allocation2], 4
      %s14 = int_to_ptr.vmem [resolvable:$true] %s13
      %19 = dma.hbm_to_vmem [thread:$0]  %s0, 768, %s14, [#allocation3], 128, 128, 8
    $region5: #{tpu_custom_call.1} parent=1 // pred_fallthru
      _
    // Predicated region
    $region6: #{tpu_custom_call.1} parent=1 // pred_check
      _
    $region7: #{tpu_custom_call.1} parent=1 // pred_check_branch
      %21 = sbr.rel (0) target = $region9
    $region8: #{tpu_custom_call.1} parent=1 // pred_region
      %22 = dma.done [#allocation3], 768
    $region9: #{tpu_custom_call.1} parent=1 // pred_fallthru
      _
    %v23 = vld [vmem:[#allocation2] sm:$0xff]
    %v24 = vld [vmem:[#allocation2 + $0x8] sm:$0xff]
    %v25 = vld [vmem:[#allocation2 + $0x10] sm:$0xff]
    %v26 = vld [vmem:[#allocation2 + $0x18] sm:$0xff]
    %v27 = vld [vmem:[#allocation2 + $0x20] sm:$0xff]
    %v28 = vld [vmem:[#allocation2 + $0x28] sm:$0xff]
    %v29 = vrot.slane %v23, 7
    %v30 = vrot.slane %v24, 7
    %v31 = vrot.slane %v25, 7
    %v32 = vrot.slane %v26, 7
    %v33 = vrot.slane %v27, 7
    %v34 = vrot.slane %v28, 7
    %v35 = vlaneseq
    %v36 = vshrl.u32 %v35, 7
    %vm37 = vcmp.lt.s32.totalorder %v36, 1
    %v38 = vsel %vm37, %v33, %v34
    %v39 = vsel %vm37, %v32, %v33
    %v40 = vsel %vm37, %v31, %v32
    %v41 = vsel %vm37, %v30, %v31
    %v42 = vsel %vm37, %v29, %v30
    %v43 = vsel %vm37, %v34, %v29
    %44 = vrot.lane.b32.xlu0 %v43, 1
    %v45 = vpop.permute.xlu0 %44
    %46 = vrot.lane.b32.xlu0 %v42, 1
    %v47 = vpop.permute.xlu0 %46
    %48 = vrot.lane.b32.xlu0 %v41, 1
    %v49 = vpop.permute.xlu0 %48
    %50 = vrot.lane.b32.xlu0 %v40, 1
    %v51 = vpop.permute.xlu0 %50
    %52 = vrot.lane.b32.xlu0 %v39, 1
    %v53 = vpop.permute.xlu0 %52
    %54 = vrot.lane.b32.xlu0 %v38, 1
    %v55 = vpop.permute.xlu0 %54
    %56 = vrot.lane.b32.xlu0 %v43, 127
    %v57 = vpop.permute.xlu0 %56
    %58 = vrot.lane.b32.xlu0 %v42, 127
    %v59 = vpop.permute.xlu0 %58
    %60 = vrot.lane.b32.xlu0 %v41, 127
    %v61 = vpop.permute.xlu0 %60
    %62 = vrot.lane.b32.xlu0 %v40, 127
    %v63 = vpop.permute.xlu0 %62
    %64 = vrot.lane.b32.xlu0 %v39, 127
    %v65 = vpop.permute.xlu0 %64
    %66 = vrot.lane.b32.xlu0 %v38, 127
    %v67 = vpop.permute.xlu0 %66
    %v68 = vmin.f32 %v45, %v43
    %v69 = vmin.f32 %v47, %v42
    %v70 = vmin.f32 %v49, %v41
    %v71 = vmin.f32 %v51, %v40
    %v72 = vmin.f32 %v53, %v39
    %v73 = vmin.f32 %v55, %v38
    %v74 = vmax.f32 %v45, %v43
    %v75 = vmax.f32 %v47, %v42
    %v76 = vmax.f32 %v49, %v41
    %v77 = vmax.f32 %v51, %v40
    %v78 = vmax.f32 %v53, %v39
    %v79 = vmax.f32 %v55, %v38
    %v80 = vmin.f32 %v68, %v57
    %v81 = vmin.f32 %v69, %v59
    %v82 = vmin.f32 %v70, %v61
    %v83 = vmin.f32 %v71, %v63
    %v84 = vmin.f32 %v72, %v65
    %v85 = vmin.f32 %v73, %v67
    %v86 = vmax.f32 %v74, %v57
    %v87 = vmax.f32 %v75, %v59
    %v88 = vmax.f32 %v76, %v61
    %v89 = vmax.f32 %v77, %v63
    %v90 = vmax.f32 %v78, %v65
    %v91 = vmax.f32 %v79, %v67
    %v92 = vmin.f32 %v74, %v57
    %v93 = vmin.f32 %v75, %v59
    %v94 = vmin.f32 %v76, %v61
    %v95 = vmin.f32 %v77, %v63
    %v96 = vmin.f32 %v78, %v65
    %v97 = vmin.f32 %v79, %v67
    %v98 = vmax.f32 %v68, %v92
    %v99 = vmax.f32 %v69, %v93
    %v100 = vmax.f32 %v70, %v94
    %v101 = vmax.f32 %v71, %v95
    %v102 = vmax.f32 %v72, %v96
    %v103 = vmax.f32 %v73, %v97
    %104 = vrot.lane.b32.xlu0 %v23, 1
    %v105 = vpop.permute.xlu0 %104
    %106 = vrot.lane.b32.xlu0 %v24, 1
    %v107 = vpop.permute.xlu0 %106
    %108 = vrot.lane.b32.xlu0 %v25, 1
    %v109 = vpop.permute.xlu0 %108
    %110 = vrot.lane.b32.xlu0 %v26, 1
    %v111 = vpop.permute.xlu0 %110
    %112 = vrot.lane.b32.xlu0 %v27, 1
    %v113 = vpop.permute.xlu0 %112
    %114 = vrot.lane.b32.xlu0 %v28, 1
    %v115 = vpop.permute.xlu0 %114
    %116 = vrot.lane.b32.xlu0 %v23, 127
    %v117 = vpop.permute.xlu0 %116
    %118 = vrot.lane.b32.xlu0 %v24, 127
    %v119 = vpop.permute.xlu0 %118
    %120 = vrot.lane.b32.xlu0 %v25, 127
    %v121 = vpop.permute.xlu0 %120
    %122 = vrot.lane.b32.xlu0 %v26, 127
    %v123 = vpop.permute.xlu0 %122
    %124 = vrot.lane.b32.xlu0 %v27, 127
    %v125 = vpop.permute.xlu0 %124
    %126 = vrot.lane.b32.xlu0 %v28, 127
    %v127 = vpop.permute.xlu0 %126
    %v128 = vmin.f32 %v105, %v23
    %v129 = vmin.f32 %v107, %v24
    %v130 = vmin.f32 %v109, %v25
    %v131 = vmin.f32 %v111, %v26
    %v132 = vmin.f32 %v113, %v27
    %v133 = vmin.f32 %v115, %v28
    %v134 = vmax.f32 %v105, %v23
    %v135 = vmax.f32 %v107, %v24
    %v136 = vmax.f32 %v109, %v25
    %v137 = vmax.f32 %v111, %v26
    %v138 = vmax.f32 %v113, %v27
    %v139 = vmax.f32 %v115, %v28
    %v140 = vmin.f32 %v128, %v117
    %v141 = vmin.f32 %v129, %v119
    %v142 = vmin.f32 %v130, %v121
    %v143 = vmin.f32 %v131, %v123
    %v144 = vmin.f32 %v132, %v125
    %v145 = vmin.f32 %v133, %v127
    %v146 = vmax.f32 %v134, %v117
    %v147 = vmax.f32 %v135, %v119
    %v148 = vmax.f32 %v136, %v121
    %v149 = vmax.f32 %v137, %v123
    %v150 = vmax.f32 %v138, %v125
    %v151 = vmax.f32 %v139, %v127
    %v152 = vmin.f32 %v134, %v117
    %v153 = vmin.f32 %v135, %v119
    %v154 = vmin.f32 %v136, %v121
    %v155 = vmin.f32 %v137, %v123
    %v156 = vmin.f32 %v138, %v125
    %v157 = vmin.f32 %v139, %v127
    %v158 = vmax.f32 %v128, %v152
    %v159 = vmax.f32 %v129, %v153
    %v160 = vmax.f32 %v130, %v154
    %v161 = vmax.f32 %v131, %v155
    %v162 = vmax.f32 %v132, %v156
    %v163 = vmax.f32 %v133, %v157
    %v164 = vmax.f32 %v80, %v140
    %v165 = vmax.f32 %v81, %v141
    %v166 = vmax.f32 %v82, %v142
    %v167 = vmax.f32 %v83, %v143
    %v168 = vmax.f32 %v84, %v144
    %v169 = vmax.f32 %v85, %v145
    %v170 = vmin.f32 %v86, %v146
    %v171 = vmin.f32 %v87, %v147
    %v172 = vmin.f32 %v88, %v148
    %v173 = vmin.f32 %v89, %v149
    %v174 = vmin.f32 %v90, %v150
    %v175 = vmin.f32 %v91, %v151
    %v176 = vrot.slane %v23, 1
    %v177 = vrot.slane %v24, 1
    %v178 = vrot.slane %v25, 1
    %v179 = vrot.slane %v26, 1
    %v180 = vrot.slane %v27, 1
    %v181 = vrot.slane %v28, 1
    %vm182 = vcmp.lt.s32.totalorder %v36, 7
    %v183 = vsel %vm182, %v180, %v181
    %v184 = vsel %vm182, %v179, %v180
    %v185 = vsel %vm182, %v178, %v179
    %v186 = vsel %vm182, %v177, %v178
    %v187 = vsel %vm182, %v176, %v177
    %v188 = vsel %vm182, %v181, %v176
    %189 = vrot.lane.b32.xlu0 %v187, 1
    %v190 = vpop.permute.xlu0 %189
    %191 = vrot.lane.b32.xlu0 %v186, 1
    %v192 = vpop.permute.xlu0 %191
    %193 = vrot.lane.b32.xlu0 %v185, 1
    %v194 = vpop.permute.xlu0 %193
    %195 = vrot.lane.b32.xlu0 %v184, 1
    %v196 = vpop.permute.xlu0 %195
    %197 = vrot.lane.b32.xlu0 %v183, 1
    %v198 = vpop.permute.xlu0 %197
    %199 = vrot.lane.b32.xlu0 %v188, 1
    %v200 = vpop.permute.xlu0 %199
    %201 = vrot.lane.b32.xlu0 %v187, 127
    %v202 = vpop.permute.xlu0 %201
    %203 = vrot.lane.b32.xlu0 %v186, 127
    %v204 = vpop.permute.xlu0 %203
    %205 = vrot.lane.b32.xlu0 %v185, 127
    %v206 = vpop.permute.xlu0 %205
    %207 = vrot.lane.b32.xlu0 %v184, 127
    %v208 = vpop.permute.xlu0 %207
    %209 = vrot.lane.b32.xlu0 %v183, 127
    %v210 = vpop.permute.xlu0 %209
    %211 = vrot.lane.b32.xlu0 %v188, 127
    %v212 = vpop.permute.xlu0 %211
    %v213 = vmin.f32 %v190, %v187
    %v214 = vmin.f32 %v192, %v186
    %v215 = vmin.f32 %v194, %v185
    %v216 = vmin.f32 %v196, %v184
    %v217 = vmin.f32 %v198, %v183
    %v218 = vmin.f32 %v200, %v188
    %v219 = vmax.f32 %v190, %v187
    %v220 = vmax.f32 %v192, %v186
    %v221 = vmax.f32 %v194, %v185
    %v222 = vmax.f32 %v196, %v184
    %v223 = vmax.f32 %v198, %v183
    %v224 = vmax.f32 %v200, %v188
    %v225 = vmin.f32 %v213, %v202
    %v226 = vmin.f32 %v214, %v204
    %v227 = vmin.f32 %v215, %v206
    %v228 = vmin.f32 %v216, %v208
    %v229 = vmin.f32 %v217, %v210
    %v230 = vmin.f32 %v218, %v212
    %v231 = vmax.f32 %v219, %v202
    %v232 = vmax.f32 %v220, %v204
    %v233 = vmax.f32 %v221, %v206
    %v234 = vmax.f32 %v222, %v208
    %v235 = vmax.f32 %v223, %v210
    %v236 = vmax.f32 %v224, %v212
    %v237 = vmin.f32 %v219, %v202
    %v238 = vmin.f32 %v220, %v204
    %v239 = vmin.f32 %v221, %v206
    %v240 = vmin.f32 %v222, %v208
    %v241 = vmin.f32 %v223, %v210
    %v242 = vmin.f32 %v224, %v212
    %v243 = vmax.f32 %v213, %v237
    %v244 = vmax.f32 %v214, %v238
    %v245 = vmax.f32 %v215, %v239
    %v246 = vmax.f32 %v216, %v240
    %v247 = vmax.f32 %v217, %v241
    %v248 = vmax.f32 %v218, %v242
    %v249 = vmax.f32 %v164, %v225
    %v250 = vmax.f32 %v165, %v226
    %v251 = vmax.f32 %v166, %v227
    %v252 = vmax.f32 %v167, %v228
    %v253 = vmax.f32 %v168, %v229
    %v254 = vmax.f32 %v169, %v230
    %v255 = vmin.f32 %v170, %v231
    %v256 = vmin.f32 %v171, %v232
    %v257 = vmin.f32 %v172, %v233
    %v258 = vmin.f32 %v173, %v234
    %v259 = vmin.f32 %v174, %v235
    %v260 = vmin.f32 %v175, %v236
    %v261 = vmin.f32 %v98, %v158
    %v262 = vmin.f32 %v99, %v159
    %v263 = vmin.f32 %v100, %v160
    %v264 = vmin.f32 %v101, %v161
    %v265 = vmin.f32 %v102, %v162
    %v266 = vmin.f32 %v103, %v163
    %v267 = vmax.f32 %v98, %v158
    %v268 = vmax.f32 %v99, %v159
    %v269 = vmax.f32 %v100, %v160
    %v270 = vmax.f32 %v101, %v161
    %v271 = vmax.f32 %v102, %v162
    %v272 = vmax.f32 %v103, %v163
    %v273 = vmin.f32 %v267, %v243
    %v274 = vmin.f32 %v268, %v244
    %v275 = vmin.f32 %v269, %v245
    %v276 = vmin.f32 %v270, %v246
    %v277 = vmin.f32 %v271, %v247
    %v278 = vmin.f32 %v272, %v248
    %v279 = vmax.f32 %v261, %v273
    %v280 = vmax.f32 %v262, %v274
    %v281 = vmax.f32 %v263, %v275
    %v282 = vmax.f32 %v264, %v276
    %v283 = vmax.f32 %v265, %v277
    %v284 = vmax.f32 %v266, %v278
    %v285 = vmin.f32 %v249, %v279
    %v286 = vmin.f32 %v250, %v280
    %v287 = vmin.f32 %v251, %v281
    %v288 = vmin.f32 %v252, %v282
    %v289 = vmin.f32 %v253, %v283
    %v290 = vmin.f32 %v254, %v284
    %v291 = vmax.f32 %v249, %v279
    %v292 = vmax.f32 %v250, %v280
    %v293 = vmax.f32 %v251, %v281
    %v294 = vmax.f32 %v252, %v282
    %v295 = vmax.f32 %v253, %v283
    %v296 = vmax.f32 %v254, %v284
    %v297 = vmin.f32 %v291, %v255
    %v298 = vmin.f32 %v292, %v256
    %v299 = vmin.f32 %v293, %v257
    %v300 = vmin.f32 %v294, %v258
    %v301 = vmin.f32 %v295, %v259
    %v302 = vmin.f32 %v296, %v260
    %v303 = vmax.f32 %v285, %v297
    %v304 = vmax.f32 %v286, %v298
    %v305 = vmax.f32 %v287, %v299
    %v306 = vmax.f32 %v288, %v300
    %v307 = vmax.f32 %v289, %v301
    %v308 = vmax.f32 %v290, %v302
    %309 = vst [vmem:[#allocation5] sm:$0xff] %v303
    %310 = vst [vmem:[#allocation5 + $0x8] sm:$0xff] %v304
    %311 = vst [vmem:[#allocation5 + $0x10] sm:$0xff] %v305
    %312 = vst [vmem:[#allocation5 + $0x18] sm:$0xff] %v306
    %313 = vst [vmem:[#allocation5 + $0x20] sm:$0xff] %v307
    %314 = vst [vmem:[#allocation5 + $0x28] sm:$0xff] %v308
    // Predicated region
    $region10: #{tpu_custom_call.1} parent=1 // pred_check
      _
    $region11: #{tpu_custom_call.1} parent=1 // pred_check_branch
      %316 = sbr.rel (0) target = $region13
    $region12: #{tpu_custom_call.1} parent=1 // pred_region
      %s318 = ssub.s32 768, 768
      %319 = vsyncadd [#allocation4], %s318
      %s320 = sshll.u32 [#allocation5], 4
      %s321 = int_to_ptr.vmem [resolvable:$true] %s320
      %326 = dma.vmem_to_hbm [thread:$0]  %s321, 768, %s1, [#allocation4], 128, 128, 8
    $region13: #{tpu_custom_call.1} parent=1 // pred_fallthru
      _
    // Predicated region
    $region14: #{tpu_custom_call.1} parent=1 // pred_check
      _
    $region15: #{tpu_custom_call.1} parent=1 // pred_check_branch
      %328 = sbr.rel (0) target = $region17
    $region16: #{tpu_custom_call.1} parent=1 // pred_region
      %329 = dma.done [#allocation4], 768
    $region17: #{tpu_custom_call.1} parent=1 // pred_fallthru
      _
    %330 = vsyncpa [#allocation3], 1
    %331 = vsyncpa [#allocation4], 1

</llo_original>
